<compile_context>
chip_gen: v5e
topology: v5e:2x2
jax: 0.10.0
libtpu: 0.0.40
codegen_flags: <defaults>
</compile_context>

<pallas_src>
import jax
import jax.numpy as jnp
from jax import lax
from jax.experimental import pallas as pl
from jax.experimental.pallas import tpu as pltpu

IN_FEATURES = 100
OUT_FEATURES = 10
DEFAULT_BLOCK_ROWS = 4096  # double-buffered inputs ~6.4 MiB f32: fits scoped VMEM


def _add_linear_relu_kernel(x_ref, y_ref, w_ref, b_ref, o_ref):
    # Elementwise add (VPU) -> matmul (MXU, f32 accumulate) -> bias + relu (VPU).
    z = x_ref[...] + y_ref[...]                               # (TB, 100)
    acc = lax.dot_general(
        z, w_ref[...],
        dimension_numbers=(((1,), (1,)), ((), ())),           # z @ w.T, no transpose copy
        preferred_element_type=jnp.float32)                   # (TB, 10)
    acc = acc + b_ref[...]                                    # broadcast (1, 10)
    o_ref[...] = jnp.maximum(acc, 0.0).astype(o_ref.dtype)


def my_module2_forward(x, y, weight, bias, *, block_rows=DEFAULT_BLOCK_ROWS):
    """x, y: (B, 100) f32; weight: (10, 100) f32; bias: (10,) f32 -> (B, 10) f32."""
    B = x.shape[0]
    b2 = bias.reshape(1, OUT_FEATURES)  # tiny metadata reshape for 2-D broadcast

    # Tile the batch. A block's sublane dim must be a multiple of 8 unless it
    # equals the full batch extent.
    if B <= block_rows:
        tb = B
    else:
        tb = max(8, (block_rows // 8) * 8)
    grid = (pl.cdiv(B, tb),)

    cost = pl.CostEstimate(
        flops=2 * B * IN_FEATURES * OUT_FEATURES + B * IN_FEATURES,
        transcendentals=0,
        bytes_accessed=(2 * B * IN_FEATURES + B * OUT_FEATURES
                        + IN_FEATURES * OUT_FEATURES + OUT_FEATURES) * 4,
    )

    return pl.pallas_call(
        _add_linear_relu_kernel,
        out_shape=jax.ShapeDtypeStruct((B, OUT_FEATURES), jnp.float32),
        grid=grid,
        in_specs=[
            pl.BlockSpec((tb, IN_FEATURES), lambda i: (i, 0)),            # x tile
            pl.BlockSpec((tb, IN_FEATURES), lambda i: (i, 0)),            # y tile
            pl.BlockSpec((OUT_FEATURES, IN_FEATURES), lambda i: (0, 0)),  # weight (resident)
            pl.BlockSpec((1, OUT_FEATURES), lambda i: (0, 0)),            # bias (resident)
        ],
        out_specs=pl.BlockSpec((tb, OUT_FEATURES), lambda i: (i, 0)),
        compiler_params=pltpu.CompilerParams(
            dimension_semantics=("parallel",)),
        cost_estimate=cost,
    )(x, y, weight, b2)


if __name__ == "__main__":
    key = jax.random.PRNGKey(0)
    k_x, k_y, k_w, k_b = jax.random.split(key, 4)

    # Deterministic parameter init mimicking nn.Linear's U(-1/sqrt(in), 1/sqrt(in)).
    bound = 1.0 / jnp.sqrt(jnp.float32(IN_FEATURES))
    weight = jax.random.uniform(
        k_w, (OUT_FEATURES, IN_FEATURES), minval=-bound, maxval=bound,
        dtype=jnp.float32)
    bias = jax.random.uniform(
        k_b, (OUT_FEATURES,), minval=-bound, maxval=bound, dtype=jnp.float32)

    # --- Small-batch check (single tile) ---
    B = 8
    x = jax.random.normal(k_x, (B, IN_FEATURES), dtype=jnp.float32)
    y = jax.random.normal(k_y, (B, IN_FEATURES), dtype=jnp.float32)

    out = jax.block_until_ready(my_module2_forward(x, y, weight, bias))
    ref = jnp.maximum((x + y) @ weight.T + bias, 0.0)
    assert out.shape == (B, OUT_FEATURES)
    assert jnp.allclose(out, ref, atol=1e-5, rtol=1e-5)

    # --- Multi-tile + ragged-last-tile check (small block to exercise the grid) ---
    B2 = 200
    x2 = jax.random.normal(k_x, (B2, IN_FEATURES), dtype=jnp.float32)
    y2 = jax.random.normal(k_y, (B2, IN_FEATURES), dtype=jnp.float32)

    out2 = jax.block_until_ready(
        my_module2_forward(x2, y2, weight, bias, block_rows=64))  # grid = 4, ragged tail
    ref2 = jnp.maximum((x2 + y2) @ weight.T + bias, 0.0)
    assert out2.shape == (B2, OUT_FEATURES)
    assert jnp.allclose(out2, ref2, atol=1e-5, rtol=1e-5)

    print("KERNEL_OK")
</pallas_src>

<mosaic_0001>
module attributes {stable_mosaic.version = 11 : i64} {
  func.func @_add_linear_relu_kernel(%arg0: i32, %arg1: memref<8x100xf32, #tpu.memory_space<vmem>>, %arg2: memref<8x100xf32, #tpu.memory_space<vmem>>, %arg3: memref<10x100xf32, #tpu.memory_space<vmem>>, %arg4: memref<1x10xf32, #tpu.memory_space<vmem>>, %arg5: memref<8x10xf32, #tpu.memory_space<vmem>>) attributes {dimension_semantics = [#tpu.dimension_semantics<parallel>], iteration_bounds = array<i64: 1>, scalar_prefetch = 0 : i64, scratch_operands = 0 : i64, tpu.core_type = #tpu.core_type<tc>, window_params = [{transform_indices = @transform_0, window_bounds = array<i64: 8, 100>}, {transform_indices = @transform_1, window_bounds = array<i64: 8, 100>}, {pipeline_mode = #tpu.pipeline_mode<synchronous>, transform_indices = @transform_2, window_bounds = array<i64: 10, 100>}, {pipeline_mode = #tpu.pipeline_mode<synchronous>, transform_indices = @transform_3, window_bounds = array<i64: 1, 10>}, {transform_indices = @transform_4, window_bounds = array<i64: 8, 10>}]} {
    %c0 = arith.constant 0 : index
    %c0_0 = arith.constant 0 : index
    %0 = vector.load %arg1[%c0, %c0_0] : memref<8x100xf32, #tpu.memory_space<vmem>>, vector<8x100xf32>
    %c0_1 = arith.constant 0 : index
    %c0_2 = arith.constant 0 : index
    %1 = vector.load %arg2[%c0_1, %c0_2] : memref<8x100xf32, #tpu.memory_space<vmem>>, vector<8x100xf32>
    %2 = arith.addf %0, %1 : vector<8x100xf32>
    %c0_3 = arith.constant 0 : index
    %c0_4 = arith.constant 0 : index
    %3 = vector.load %arg3[%c0_3, %c0_4] : memref<10x100xf32, #tpu.memory_space<vmem>>, vector<10x100xf32>
    %cst = arith.constant dense<0.000000e+00> : vector<8x10xf32>
    %4 = tpu.matmul %2, %3, %cst {dimension_numbers = #tpu.dot_dimension_numbers<[1], [1], [0], [0], [0, 0, 1, 0], [], []>} : vector<8x100xf32>, vector<10x100xf32>, vector<8x10xf32> -> vector<8x10xf32>
    %c0_5 = arith.constant 0 : index
    %c0_6 = arith.constant 0 : index
    %5 = vector.load %arg4[%c0_5, %c0_6] : memref<1x10xf32, #tpu.memory_space<vmem>>, vector<1x10xf32>
    %6 = vector.broadcast %5 : vector<1x10xf32> to vector<8x10xf32>
    %7 = arith.addf %4, %6 : vector<8x10xf32>
    %cst_7 = arith.constant 0.000000e+00 : f32
    %8 = vector.broadcast %cst_7 : f32 to vector<8x10xf32>
    %9 = arith.maximumf %7, %8 : vector<8x10xf32>
    %c0_8 = arith.constant 0 : index
    %c0_9 = arith.constant 0 : index
    %10 = vector.load %arg5[%c0_8, %c0_9] : memref<8x10xf32, #tpu.memory_space<vmem>>, vector<8x10xf32>
    tpu.vector_store %arg5[%c0_8, %c0_9], %9 {strides = array<i32>} : memref<8x10xf32, #tpu.memory_space<vmem>>, vector<8x10xf32>,
    return
  }
  func.func @transform_0(%arg0: i32) -> (i32, i32) {
    %c0_i32 = arith.constant 0 : i32
    %c0_i32_0 = arith.constant 0 : i32
    return %arg0, %c0_i32 : i32, i32
  }
  func.func @transform_1(%arg0: i32) -> (i32, i32) {
    %c0_i32 = arith.constant 0 : i32
    %c0_i32_0 = arith.constant 0 : i32
    return %arg0, %c0_i32 : i32, i32
  }
  func.func @transform_2(%arg0: i32) -> (i32, i32) {
    %c0_i32 = arith.constant 0 : i32
    %c0_i32_0 = arith.constant 0 : i32
    %c0_i32_1 = arith.constant 0 : i32
    return %c0_i32, %c0_i32_0 : i32, i32
  }
  func.func @transform_3(%arg0: i32) -> (i32, i32) {
    %c0_i32 = arith.constant 0 : i32
    %c0_i32_0 = arith.constant 0 : i32
    %c0_i32_1 = arith.constant 0 : i32
    return %c0_i32, %c0_i32_0 : i32, i32
  }
  func.func @transform_4(%arg0: i32) -> (i32, i32) {
    %c0_i32 = arith.constant 0 : i32
    %c0_i32_0 = arith.constant 0 : i32
    return %arg0, %c0_i32 : i32, i32
  }
}

</mosaic_0001>

<llo_original>
// kernel: tpu_custom_call.1
$region0: #{tpu_custom_call.1}
  #allocation0 [shape = 'u32[]', space=smem, size = 0x4, offset = 0x4, fixed_abs, tag = 'smem constant byte address 0x4 - core index']
  #allocation1 [shape = 'u32[72,128]{1,0:T(1,128)}', space=vmem, size = 0x9000, scoped, tag = 'internal scratch']
  %s0 = inlined_call_operand.hbm [shape: f32[8,100], index: 0, kind: input, shape index: {}]
  %s1 = inlined_call_operand.hbm [shape: f32[8,100], index: 1, kind: input, shape index: {}]
  %s2 = inlined_call_operand.hbm [shape: f32[10,100], index: 2, kind: input, shape index: {}]
  %s3 = inlined_call_operand.vmem [shape: f32[1,10], index: 3, kind: input, shape index: {}]
  %s4 = inlined_call_operand.hbm [shape: f32[8,10], index: 4, kind: output, shape index: {}]
  %s5 = sld [smem:[#allocation0]]
  $region38: #{tpu_custom_call.1} parent=0
    _
  %s7 = ssub.s32 1, %s5
  %s8 = scalar_select 0, %s7, %s5
  $region1: #{tpu_custom_call.1} parent=0
    #allocation2 [shape = 'u8[4096]{0}', space=vmem, size = 0x1000, scoped, tag = 'input window, operand 0, single buffered']
    #allocation3 [shape = 's32[1]{0}', space=sflag, size = 0x4, scoped, tag = 'scoped memory for tpu_custom_call.1']
    #allocation4 [shape = 's32[1]{0}', space=sflag, size = 0x4, scoped, tag = 'scoped memory for tpu_custom_call.1']
    #allocation5 [shape = 'u8[4096]{0}', space=vmem, size = 0x1000, scoped, tag = 'input window, operand 1, single buffered']
    #allocation6 [shape = 's32[1]{0}', space=sflag, size = 0x4, scoped, tag = 'scoped memory for tpu_custom_call.1']
    #allocation7 [shape = 'u8[8192]{0}', space=vmem, size = 0x2000, scoped, tag = 'input window, operand 2, single buffered']
    #allocation8 [shape = 'u8[4096]{0}', space=vmem, size = 0x1000, scoped, tag = 'output window, operand 0, single buffered']
    %9 = vsyncpa [#allocation3], 0
    %10 = vsyncpa [#allocation6], 0
    %11 = vsyncpa [#allocation4], 0
    // Predicated region
    $region2: #{tpu_custom_call.1} parent=1 // pred_check
      _
    $region3: #{tpu_custom_call.1} parent=1 // pred_check_branch
      %13 = sbr.rel (0) target = $region5
    $region4: #{tpu_custom_call.1} parent=1 // pred_region
      %15 = vsyncadd [#allocation3], 0
      %s17 = sshll.u32 %s0, 4
      %s18 = int_to_ptr.hbm [resolvable:$true] %s17
      %s19 = sshll.u32 [#allocation2], 4
      %s20 = int_to_ptr.vmem [resolvable:$true] %s19
      %22 = dma.hbm_to_vmem [thread:$0]  %s18, 128, %s20, [#allocation3]
    $region5: #{tpu_custom_call.1} parent=1 // pred_fallthru
      _
    // Predicated region
    $region6: #{tpu_custom_call.1} parent=1 // pred_check
      _
    $region7: #{tpu_custom_call.1} parent=1 // pred_check_branch
      %24 = sbr.rel (0) target = $region9
    $region8: #{tpu_custom_call.1} parent=1 // pred_region
      %26 = vsyncadd [#allocation6], 0
      %s28 = sshll.u32 %s1, 4
      %s29 = int_to_ptr.hbm [resolvable:$true] %s28
      %s30 = sshll.u32 [#allocation5], 4
      %s31 = int_to_ptr.vmem [resolvable:$true] %s30
      %33 = dma.hbm_to_vmem [thread:$0]  %s29, 128, %s31, [#allocation6]
    $region9: #{tpu_custom_call.1} parent=1 // pred_fallthru
      _
    // Predicated region
    $region10: #{tpu_custom_call.1} parent=1 // pred_check
      _
    $region11: #{tpu_custom_call.1} parent=1 // pred_check_branch
      %35 = sbr.rel (0) target = $region13
    $region12: #{tpu_custom_call.1} parent=1 // pred_region
      %37 = vsyncadd [#allocation6], 0
      %s38 = sshll.u32 %s2, 4
      %s39 = int_to_ptr.hbm [resolvable:$true] %s38
      %s40 = sshll.u32 [#allocation7], 4
      %s41 = int_to_ptr.vmem [resolvable:$true] %s40
      %46 = dma.hbm_to_vmem [thread:$0]  %s39, 256, %s41, [#allocation6], 128, 128, 8
    $region13: #{tpu_custom_call.1} parent=1 // pred_fallthru
      _
    // Predicated region
    $region14: #{tpu_custom_call.1} parent=1 // pred_check
      _
    $region15: #{tpu_custom_call.1} parent=1 // pred_check_branch
      %48 = sbr.rel (0) target = $region17
    $region16: #{tpu_custom_call.1} parent=1 // pred_region
      _
    $region17: #{tpu_custom_call.1} parent=1 // pred_fallthru
      _
    // Predicated region
    $region18: #{tpu_custom_call.1} parent=1 // pred_check
      _
    $region19: #{tpu_custom_call.1} parent=1 // pred_check_branch
      %50 = sbr.rel (0) target = $region21
    $region20: #{tpu_custom_call.1} parent=1 // pred_region
      %52 = dma.done [#allocation3], 128
    $region21: #{tpu_custom_call.1} parent=1 // pred_fallthru
      _
    // Predicated region
    $region22: #{tpu_custom_call.1} parent=1 // pred_check
      _
    $region23: #{tpu_custom_call.1} parent=1 // pred_check_branch
      %54 = sbr.rel (0) target = $region25
    $region24: #{tpu_custom_call.1} parent=1 // pred_region
      %56 = dma.done [#allocation6], 128
    $region25: #{tpu_custom_call.1} parent=1 // pred_fallthru
      _
    // Predicated region
    $region26: #{tpu_custom_call.1} parent=1 // pred_check
      _
    $region27: #{tpu_custom_call.1} parent=1 // pred_check_branch
      %58 = sbr.rel (0) target = $region29
    $region28: #{tpu_custom_call.1} parent=1 // pred_region
      %60 = dma.done [#allocation6], 256
    $region29: #{tpu_custom_call.1} parent=1 // pred_fallthru
      _
    %v61 = vld [vmem:[#allocation2] sm:$0xff]
    %v62 = vld [vmem:[#allocation5] sm:$0xff]
    %v63 = vadd.f32 %v61, %v62
    %v64 = vld [vmem:[#allocation7] sm:$0xff]
    %v65 = vld [vmem:[#allocation7 + $0x8] sm:$0x3]
    %v66 = vld [vmem:[%s3] sm:$0x1]
    %v68 = vperm.slane %v66, 0
    %vm70 = vcmask 818176
    %v72 = vsel %vm70, %v63, 0
    %v75 = vsel %vm70, %v64, 0
    %v78 = vsel %vm70, %v65, 0
    %80 = vmatpush.xpose.msra.mxu0 0.0
    %81 = vmatpush.xpose.msra.mxu0 0.0
    %82 = vmatpush.xpose.msra.mxu0 0.0
    %83 = vmatpush.xpose.msra.mxu0 0.0
    %84 = vmatpush.xpose.msra.mxu0 0.0
    %85 = vmatpush.xpose.msra.mxu0 0.0
    %86 = vmatpush.xpose.msra.mxu0 0.0
    %87 = vmatpush.xpose.msra.mxu0 0.0
    %88 = vmatpush.xpose.msra.mxu0 0.0
    %89 = vmatpush.xpose.msra.mxu0 0.0
    %90 = vmatpush.xpose.msra.mxu0 0.0
    %91 = vmatpush.xpose.msra.mxu0 0.0
    %92 = vmatpush.xpose.msra.mxu0 0.0
    %93 = vmatpush.xpose.msra.mxu0 0.0
    %94 = vmatpush.xpose.msra.mxu0 %v78
    %95 = vmatpush.xpose.msra.mxu0 %v75
    %96 = vmatmul.f32.gmra.mxu0 %v72
    %v97 = vpop.f32.mrf.mxu0
    %v98 = vadd.f32 %v68, %v97
    %99 = vdwg.mxu0
    %v100 = vmax.f32 %v98, 0.0
    %vm101 = vcmask 80896
    %102 = vst.msk [vmem:[#allocation8] sm:$0xff] %vm101, %v100
    // Predicated region
    $region30: #{tpu_custom_call.1} parent=1 // pred_check
      _
    $region31: #{tpu_custom_call.1} parent=1 // pred_check_branch
      %104 = sbr.rel (0) target = $region33
    $region32: #{tpu_custom_call.1} parent=1 // pred_region
      %106 = vsyncadd [#allocation4], 0
      %s108 = sshll.u32 [#allocation8], 4
      %s109 = int_to_ptr.vmem [resolvable:$true] %s108
      %s110 = sshll.u32 %s4, 4
      %s111 = int_to_ptr.hbm [resolvable:$true] %s110
      %113 = dma.vmem_to_hbm [thread:$0]  %s109, 128, %s111, [#allocation4]
    $region33: #{tpu_custom_call.1} parent=1 // pred_fallthru
      _
    // Predicated region
    $region34: #{tpu_custom_call.1} parent=1 // pred_check
      _
    $region35: #{tpu_custom_call.1} parent=1 // pred_check_branch
      %115 = sbr.rel (0) target = $region37
    $region36: #{tpu_custom_call.1} parent=1 // pred_region
      %117 = dma.done [#allocation4], 128
    $region37: #{tpu_custom_call.1} parent=1 // pred_fallthru
      _
    %118 = vsyncpa [#allocation3], 1
    %119 = vsyncpa [#allocation6], 1
    %120 = vsyncpa [#allocation4], 1

</llo_original>
